<compile_context>
chip_gen: v7x
topology: tpu7x:2x2x1
jax: 0.10.0
libtpu: 0.0.40
codegen_flags: <defaults>
</compile_context>

<pallas_src>
import jax
import jax.numpy as jnp
from jax.experimental import pallas as pl
from jax.experimental.pallas import tpu as pltpu


# --------------------------------------------------------------------------
# Kernels
# --------------------------------------------------------------------------
def _head_kernel_2d(x_ref, w_ref, b_ref, o_ref):
    # x: (Cin, T)  w: (Cout, Cin)  b: (Cout, 1) f32  o: (Cout, T)
    acc = jnp.dot(w_ref[...], x_ref[...], preferred_element_type=jnp.float32)
    o_ref[...] = (acc + b_ref[...]).astype(o_ref.dtype)


def _head_kernel_3d(x_ref, w_ref, b_ref, o_ref):
    # x: (N, Cin, T)  w: (Cout, Cin)  b: (Cout, 1) f32  o: (N, Cout, T)
    w = w_ref[...]
    b = b_ref[...]
    for n in range(x_ref.shape[0]):           # N is small and static
        acc = jnp.dot(w, x_ref[n], preferred_element_type=jnp.float32)
        o_ref[n] = (acc + b).astype(o_ref.dtype)


# --------------------------------------------------------------------------
# One-time parameter preparation (hoisted out of the per-call wrapper)
# --------------------------------------------------------------------------
def prepare_head_params(params, compute_dtype=jnp.float32):
    """Concatenate the four heads into one (Cout, Cin) weight and (Cout, 1) f32 bias."""
    num_pred = params["w_box"].shape[1]
    num_cls = params["w_cls"].shape[1]
    num_dir = params["w_dir"].shape[1]
    num_iou = params["w_iou"].shape[1]

    w_cat = jnp.concatenate(
        [params["w_box"], params["w_cls"], params["w_dir"], params["w_iou"]], axis=1
    )                                                    # (Cin, Cout_tot)
    w = jnp.transpose(w_cat, (1, 0)).astype(compute_dtype)   # (Cout_tot, Cin)

    b = jnp.concatenate(
        [
            params["b_box"],
            params["b_cls"],
            params["b_dir"],
            jnp.zeros((num_iou,), dtype=jnp.float32),    # conv_iou has bias=False
        ],
        axis=0,
    ).astype(jnp.float32)[:, None]                       # (Cout_tot, 1), kept f32

    head_sizes = (num_pred, num_cls, num_dir, num_iou)
    return w, b, head_sizes


def _sublane_pad(c, dtype):
    """Channels rounded up to the min sublane tile for this dtype."""
    pack = max(4 // jnp.dtype(dtype).itemsize, 1)   # 1 for f32, 2 for bf16, 4 for i8
    mult = 8 * pack
    return ((c + mult - 1) // mult) * mult


# --------------------------------------------------------------------------
# Forward wrapper
# --------------------------------------------------------------------------
def head_forward(x_nchw, w, b, head_sizes, *, vmem_step_budget_bytes=18 * 2**20):
    N, Cin, H, W = x_nchw.shape
    HW = H * W
    Cout = w.shape[0]
    dtype = x_nchw.dtype
    itemsize = jnp.dtype(dtype).itemsize

    # Free reshape: channels stay on sublanes, spatial becomes the lane axis.
    x3d = x_nchw.reshape(N, Cin, HW)

    # Per-lane VMEM cost of one pipeline step: double-buffered input and
    # output blocks (sublane-padded) plus one f32 accumulator temp.
    cin_p = _sublane_pad(Cin, dtype)
    cout_p = _sublane_pad(Cout, dtype)
    per_lane = 2 * cin_p * itemsize + 2 * cout_p * itemsize + cout_p * 4
    lane_budget = max((vmem_step_budget_bytes // per_lane) // 128 * 128, 128)

    cost = pl.CostEstimate(
        flops=2 * N * HW * Cin * Cout,
        transcendentals=0,
        bytes_accessed=(N * Cin * HW + Cout * Cin + N * Cout * HW) * itemsize
        + Cout * 4,
    )
    cparams_kwargs = dict(vmem_limit_bytes=32 * 2**20)

    if N * HW <= lane_budget:
        # Small feature map: the whole batch fits in one grid step
        # -> a single DMA slab, no per-batch / per-tile grid overhead.
        out3d = pl.pallas_call(
            _head_kernel_3d,
            out_shape=jax.ShapeDtypeStruct((N, Cout, HW), dtype),
            grid_spec=pltpu.PrefetchScalarGridSpec(
                num_scalar_prefetch=0,
                grid=(1,),
                in_specs=[
                    pl.BlockSpec((N, Cin, HW), lambda i: (0, 0, 0)),
                    pl.BlockSpec((Cout, Cin), lambda i: (0, 0)),
                    pl.BlockSpec((Cout, 1), lambda i: (0, 0)),
                ],
                out_specs=pl.BlockSpec((N, Cout, HW), lambda i: (0, 0, 0)),
            ),
            compiler_params=pltpu.CompilerParams(
                dimension_semantics=("arbitrary",), **cparams_kwargs
            ),
            cost_estimate=cost,
        )(x3d, w, b)
    else:
        # Large feature map: tile the spatial (lane) axis with a VMEM-budgeted
        # tile (multi-MiB per step); last partial tile handled by Pallas masking.
        tile = min(HW, lane_budget)
        if tile < HW:
            tile = max((tile // 128) * 128, 128)
        n_hw_tiles = pl.cdiv(HW, tile)

        out3d = pl.pallas_call(
            _head_kernel_2d,
            out_shape=jax.ShapeDtypeStruct((N, Cout, HW), dtype),
            grid_spec=pltpu.PrefetchScalarGridSpec(
                num_scalar_prefetch=0,
                grid=(N, n_hw_tiles),
                in_specs=[
                    pl.BlockSpec((None, Cin, tile), lambda n, j: (n, 0, j)),
                    pl.BlockSpec((Cout, Cin), lambda n, j: (0, 0)),
                    pl.BlockSpec((Cout, 1), lambda n, j: (0, 0)),
                ],
                out_specs=pl.BlockSpec((None, Cout, tile), lambda n, j: (n, 0, j)),
            ),
            compiler_params=pltpu.CompilerParams(
                dimension_semantics=("parallel", "parallel"), **cparams_kwargs
            ),
            cost_estimate=cost,
        )(x3d, w, b)

    # Free reshape back to NCHW; channel slicing is cheap (no transpose).
    out = out3d.reshape(N, Cout, H, W)
    num_pred, num_cls, num_dir, num_iou = head_sizes
    o_box = out[:, :num_pred]
    o_cls = out[:, num_pred:num_pred + num_cls]
    o_dir = out[:, num_pred + num_cls:num_pred + num_cls + num_dir]
    o_iou = out[:, num_pred + num_cls + num_dir:]

    return {
        "reg_preds": o_box,
        "cls_preds": o_cls,
        "dir_preds": o_dir,
        "iou_preds": o_iou,
    }


# --------------------------------------------------------------------------
# Plain-JAX reference (same math as the torch 1x1 convs)
# --------------------------------------------------------------------------
def _reference_forward(x_nchw, params):
    def conv1x1(x, w, bias=None):
        y = jnp.einsum("nchw,cd->ndhw", x, w)
        if bias is not None:
            y = y + bias[None, :, None, None]
        return y

    return {
        "reg_preds": conv1x1(x_nchw, params["w_box"], params["b_box"]),
        "cls_preds": conv1x1(x_nchw, params["w_cls"], params["b_cls"]),
        "dir_preds": conv1x1(x_nchw, params["w_dir"], params["b_dir"]),
        "iou_preds": conv1x1(x_nchw, params["w_iou"], None),
    }


if __name__ == "__main__":
    # Shapes consistent with the module's forward:
    # args = {'num_input': 4, 'num_pred': 14, 'num_cls': 2, 'num_dir': 4}
    N, Cin, H, W = 2, 4, 16, 16
    num_pred, num_cls, num_dir = 14, 2, 4

    key = jax.random.PRNGKey(0)
    k = jax.random.split(key, 8)

    # Synthetic Conv2d(Cin, Cout, 1) parameters, stored transposed as (Cin, Cout)
    # with the 1x1 kernel dims squeezed out.
    scale = 1.0 / jnp.sqrt(jnp.float32(Cin))
    params = {
        "w_box": jax.random.uniform(k[0], (Cin, num_pred), jnp.float32, -scale, scale),
        "b_box": jax.random.uniform(k[1], (num_pred,), jnp.float32, -scale, scale),
        "w_cls": jax.random.uniform(k[2], (Cin, num_cls), jnp.float32, -scale, scale),
        "b_cls": jax.random.uniform(k[3], (num_cls,), jnp.float32, -scale, scale),
        "w_dir": jax.random.uniform(k[4], (Cin, num_dir), jnp.float32, -scale, scale),
        "b_dir": jax.random.uniform(k[5], (num_dir,), jnp.float32, -scale, scale),
        "w_iou": jax.random.uniform(k[6], (Cin, num_dir), jnp.float32, -scale, scale),
    }

    x = jax.random.normal(k[7], (N, Cin, H, W), jnp.float32)

    # One-time parameter prep (hoisted out of the forward path).
    w_fused, b_fused, head_sizes = prepare_head_params(params, compute_dtype=x.dtype)

    out = head_forward(x, w_fused, b_fused, head_sizes)
    out = jax.block_until_ready(out)

    ref = _reference_forward(x, params)
    for name in ("reg_preds", "cls_preds", "dir_preds", "iou_preds"):
        assert out[name].shape == ref[name].shape, name
        assert jnp.allclose(out[name], ref[name], atol=1e-5, rtol=1e-5), name

    print("KERNEL_OK")
</pallas_src>

<mosaic_0001>
module attributes {stable_mosaic.version = 11 : i64} {
  func.func @_head_kernel_3d(%arg0: i32, %arg1: memref<2x4x256xf32, #tpu.memory_space<vmem>>, %arg2: memref<24x4xf32, #tpu.memory_space<vmem>>, %arg3: memref<24x1xf32, #tpu.memory_space<vmem>>, %arg4: memref<2x24x256xf32, #tpu.memory_space<vmem>>) attributes {dimension_semantics = [#tpu.dimension_semantics<arbitrary>], iteration_bounds = array<i64: 1>, scalar_prefetch = 0 : i64, scratch_operands = 0 : i64, tpu.core_type = #tpu.core_type<tc>, window_params = [{pipeline_mode = #tpu.pipeline_mode<synchronous>, transform_indices = @transform_0, window_bounds = array<i64: 2, 4, 256>}, {pipeline_mode = #tpu.pipeline_mode<synchronous>, transform_indices = @transform_1, window_bounds = array<i64: 24, 4>}, {pipeline_mode = #tpu.pipeline_mode<synchronous>, transform_indices = @transform_2, window_bounds = array<i64: 24, 1>}, {pipeline_mode = #tpu.pipeline_mode<synchronous>, transform_indices = @transform_3, window_bounds = array<i64: 2, 24, 256>}]} {
    %c0 = arith.constant 0 : index
    %c0_0 = arith.constant 0 : index
    %0 = vector.load %arg2[%c0, %c0_0] : memref<24x4xf32, #tpu.memory_space<vmem>>, vector<24x4xf32>
    %c0_1 = arith.constant 0 : index
    %c0_2 = arith.constant 0 : index
    %1 = vector.load %arg3[%c0_1, %c0_2] : memref<24x1xf32, #tpu.memory_space<vmem>>, vector<24x1xf32>
    %c0_3 = arith.constant 0 : index
    %c0_4 = arith.constant 0 : index
    %c0_5 = arith.constant 0 : index
    %2 = vector.load %arg1[%c0_3, %c0_4, %c0_5] : memref<2x4x256xf32, #tpu.memory_space<vmem>>, vector<1x4x256xf32>
    %3 = vector.shape_cast %2 : vector<1x4x256xf32> to vector<4x256xf32>
    %cst = arith.constant dense<0.000000e+00> : vector<24x256xf32>
    %4 = tpu.matmul %0, %3, %cst {dimension_numbers = #tpu.dot_dimension_numbers<[1], [0], [0], [1], [0, 0, 1, 1], [], []>} : vector<24x4xf32>, vector<4x256xf32>, vector<24x256xf32> -> vector<24x256xf32>
    %5 = vector.broadcast %1 : vector<24x1xf32> to vector<24x256xf32>
    %6 = arith.addf %4, %5 : vector<24x256xf32>
    %c0_6 = arith.constant 0 : index
    %c0_7 = arith.constant 0 : index
    %c0_8 = arith.constant 0 : index
    %7 = vector.load %arg4[%c0_6, %c0_7, %c0_8] : memref<2x24x256xf32, #tpu.memory_space<vmem>>, vector<1x24x256xf32>
    %8 = vector.shape_cast %7 : vector<1x24x256xf32> to vector<24x256xf32>
    %9 = vector.shape_cast %6 : vector<24x256xf32> to vector<1x24x256xf32>
    tpu.vector_store %arg4[%c0_6, %c0_7, %c0_8], %9 {strides = array<i32>} : memref<2x24x256xf32, #tpu.memory_space<vmem>>, vector<1x24x256xf32>,
    %c1 = arith.constant 1 : index
    %c0_9 = arith.constant 0 : index
    %c0_10 = arith.constant 0 : index
    %10 = vector.load %arg1[%c1, %c0_9, %c0_10] : memref<2x4x256xf32, #tpu.memory_space<vmem>>, vector<1x4x256xf32>
    %11 = vector.shape_cast %10 : vector<1x4x256xf32> to vector<4x256xf32>
    %cst_11 = arith.constant dense<0.000000e+00> : vector<24x256xf32>
    %12 = tpu.matmul %0, %11, %cst_11 {dimension_numbers = #tpu.dot_dimension_numbers<[1], [0], [0], [1], [0, 0, 1, 1], [], []>} : vector<24x4xf32>, vector<4x256xf32>, vector<24x256xf32> -> vector<24x256xf32>
    %13 = vector.broadcast %1 : vector<24x1xf32> to vector<24x256xf32>
    %14 = arith.addf %12, %13 : vector<24x256xf32>
    %c1_12 = arith.constant 1 : index
    %c0_13 = arith.constant 0 : index
    %c0_14 = arith.constant 0 : index
    %15 = vector.load %arg4[%c1_12, %c0_13, %c0_14] : memref<2x24x256xf32, #tpu.memory_space<vmem>>, vector<1x24x256xf32>
    %16 = vector.shape_cast %15 : vector<1x24x256xf32> to vector<24x256xf32>
    %17 = vector.shape_cast %14 : vector<24x256xf32> to vector<1x24x256xf32>
    tpu.vector_store %arg4[%c1_12, %c0_13, %c0_14], %17 {strides = array<i32>} : memref<2x24x256xf32, #tpu.memory_space<vmem>>, vector<1x24x256xf32>,
    return
  }
  func.func @transform_0(%arg0: i32) -> (i32, i32, i32) {
    %c0_i32 = arith.constant 0 : i32
    %c0_i32_0 = arith.constant 0 : i32
    %c0_i32_1 = arith.constant 0 : i32
    %c0_i32_2 = arith.constant 0 : i32
    return %c0_i32, %c0_i32_0, %c0_i32_1 : i32, i32, i32
  }
  func.func @transform_1(%arg0: i32) -> (i32, i32) {
    %c0_i32 = arith.constant 0 : i32
    %c0_i32_0 = arith.constant 0 : i32
    %c0_i32_1 = arith.constant 0 : i32
    return %c0_i32, %c0_i32_0 : i32, i32
  }
  func.func @transform_2(%arg0: i32) -> (i32, i32) {
    %c0_i32 = arith.constant 0 : i32
    %c0_i32_0 = arith.constant 0 : i32
    %c0_i32_1 = arith.constant 0 : i32
    return %c0_i32, %c0_i32_0 : i32, i32
  }
  func.func @transform_3(%arg0: i32) -> (i32, i32, i32) {
    %c0_i32 = arith.constant 0 : i32
    %c0_i32_0 = arith.constant 0 : i32
    %c0_i32_1 = arith.constant 0 : i32
    %c0_i32_2 = arith.constant 0 : i32
    return %c0_i32, %c0_i32_0, %c0_i32_1 : i32, i32, i32
  }
}

</mosaic_0001>

<llo_original>
// kernel: tpu_custom_call.1
$region0: #{tpu_custom_call.1}
  #allocation0 [shape = 'u32[]', space=smem, size = 0x4, offset = 0x4, fixed_abs, tag = 'smem constant byte address 0x4 - core index']
  #allocation1 [shape = 'u32[144,128]{1,0:T(1,128)}', space=vmem, size = 0x12000, scoped, tag = 'internal scratch']
  %s0 = inlined_call_operand.vmem [shape: f32[2,4,256], index: 0, kind: input, shape index: {}]
  %s1 = inlined_call_operand.vmem [shape: f32[24,4], index: 1, kind: input, shape index: {}]
  %s2 = inlined_call_operand.vmem [shape: f32[24,1], index: 2, kind: input, shape index: {}]
  %s3 = inlined_call_operand.hbm [shape: f32[2,24,256], index: 3, kind: output, shape index: {}]
  %s4 = sld [smem:[#allocation0]]
  $region22: #{tpu_custom_call.1} parent=0
    _
  %s6 = ssub.s32 1, %s4
  %s7 = scalar_select 0, %s6, %s4
  $region1: #{tpu_custom_call.1} parent=0
    #allocation2 [shape = 'u8[49152]{0}', space=vmem, size = 0xc000, scoped, tag = 'output window, operand 0, single buffered']
    #allocation3 [shape = 's32[1]{0}', space=sflag, size = 0x4, scoped, tag = 'scoped memory for tpu_custom_call.1']
    %8 = vsyncpa [#allocation3], 0
    // Predicated region
    $region2: #{tpu_custom_call.1} parent=1 // pred_check
      _
    $region3: #{tpu_custom_call.1} parent=1 // pred_check_branch
      %10 = sbr.rel (0) target = $region5
    $region4: #{tpu_custom_call.1} parent=1 // pred_region
      _
    $region5: #{tpu_custom_call.1} parent=1 // pred_fallthru
      _
    // Predicated region
    $region6: #{tpu_custom_call.1} parent=1 // pred_check
      _
    $region7: #{tpu_custom_call.1} parent=1 // pred_check_branch
      %12 = sbr.rel (0) target = $region9
    $region8: #{tpu_custom_call.1} parent=1 // pred_region
      _
    $region9: #{tpu_custom_call.1} parent=1 // pred_fallthru
      _
    // Predicated region
    $region10: #{tpu_custom_call.1} parent=1 // pred_check
      _
    $region11: #{tpu_custom_call.1} parent=1 // pred_check_branch
      %14 = sbr.rel (0) target = $region13
    $region12: #{tpu_custom_call.1} parent=1 // pred_region
      _
    $region13: #{tpu_custom_call.1} parent=1 // pred_fallthru
      _
    %v15 = vld [vmem:[%s1] sm:$0xff]
    %v16 = vld [vmem:[%s1 + $0x8] sm:$0xff]
    %v17 = vld [vmem:[%s1 + $0x10] sm:$0xff]
    %v18 = vld [vmem:[%s2] sm:$0xff]
    %v19 = vld [vmem:[%s2 + $0x8] sm:$0xff]
    %v20 = vld [vmem:[%s2 + $0x10] sm:$0xff]
    %v21 = vld [vmem:[%s0] sm:$0xff]
    %23 = vset.pattern.permute.xlu0 0
    %24 = vperm.xlu0 %23, %v18
    %v25 = vpop.permute.xlu0 %24
    %28 = vset.pattern.permute.xlu0 0
    %29 = vperm.xlu0 %28, %v19
    %v30 = vpop.permute.xlu0 %29
    %33 = vset.pattern.permute.xlu0 0
    %34 = vperm.xlu0 %33, %v20
    %v35 = vpop.permute.xlu0 %34
    %v38 = vcombine.high %v21, %v21
    %vm39 = vcmask 31744
    %v41 = vsel %vm39, %v15, 0
    %v44 = vsel %vm39, %v16, 0
    %v47 = vsel %vm39, %v17, 0
    %vm49 = vcmask 1043456
    %v50 = vsel %vm49, %v21, 0
    %v52 = vsel %vm49, %v38, 0
    %54 = vmatprep.subr.mxu0 %v52
    %55 = vmatpush1.msra.mxu0 %v50
    %56 = vmatprep.subr.mxu0 0.0
    %57 = vmatpush1.msra.mxu0 0.0
    %58 = vmatprep.subr.mxu0 0.0
    %59 = vmatpush1.msra.mxu0 0.0
    %60 = vmatprep.subr.mxu0 0.0
    %61 = vmatpush1.msra.mxu0 0.0
    %62 = vmatprep.subr.mxu0 0.0
    %63 = vmatpush1.msra.mxu0 0.0
    %64 = vmatprep.subr.mxu0 0.0
    %65 = vmatpush1.msra.mxu0 0.0
    %66 = vmatprep.subr.mxu0 0.0
    %67 = vmatpush1.msra.mxu0 0.0
    %68 = vmatprep.subr.mxu0 0.0
    %69 = vmatpush1.msra.mxu0 0.0
    %70 = vmatprep.subr.mxu0 0.0
    %71 = vmatpush1.msra.mxu0 0.0
    %72 = vmatprep.subr.mxu0 0.0
    %73 = vmatpush1.msra.mxu0 0.0
    %74 = vmatprep.subr.mxu0 0.0
    %75 = vmatpush1.msra.mxu0 0.0
    %76 = vmatprep.subr.mxu0 0.0
    %77 = vmatpush1.msra.mxu0 0.0
    %78 = vmatprep.subr.mxu0 0.0
    %79 = vmatpush1.msra.mxu0 0.0
    %80 = vmatprep.subr.mxu0 0.0
    %81 = vmatpush1.msra.mxu0 0.0
    %82 = vmatprep.subr.mxu0 0.0
    %83 = vmatpush1.msra.mxu0 0.0
    %84 = vmatprep.subr.mxu0 0.0
    %85 = vmatpush1.msra.mxu0 0.0
    %86 = vmatprep.subr.mxu0 0.0
    %87 = vmatpush1.msra.mxu0 0.0
    %88 = vmatprep.subr.mxu0 0.0
    %89 = vmatpush1.msra.mxu0 0.0
    %90 = vmatprep.subr.mxu0 0.0
    %91 = vmatpush1.msra.mxu0 0.0
    %92 = vmatprep.subr.mxu0 0.0
    %93 = vmatpush1.msra.mxu0 0.0
    %94 = vmatprep.subr.mxu0 0.0
    %95 = vmatpush1.msra.mxu0 0.0
    %96 = vmatprep.subr.mxu0 0.0
    %97 = vmatpush1.msra.mxu0 0.0
    %98 = vmatprep.subr.mxu0 0.0
    %99 = vmatpush1.msra.mxu0 0.0
    %100 = vmatprep.subr.mxu0 0.0
    %101 = vmatpush1.msra.mxu0 0.0
    %102 = vmatprep.subr.mxu0 0.0
    %103 = vmatpush1.msra.mxu0 0.0
    %104 = vmatprep.subr.mxu0 0.0
    %105 = vmatpush1.msra.mxu0 0.0
    %106 = vmatprep.subr.mxu0 0.0
    %107 = vmatpush1.msra.mxu0 0.0
    %108 = vmatprep.subr.mxu0 0.0
    %109 = vmatpush1.msra.mxu0 0.0
    %110 = vmatprep.subr.mxu0 0.0
    %111 = vmatpush1.msra.mxu0 0.0
    %112 = vmatprep.subr.mxu0 0.0
    %113 = vmatpush1.msra.mxu0 0.0
    %114 = vmatprep.subr.mxu0 0.0
    %115 = vmatpush1.msra.mxu0 0.0
    %116 = vmatprep.subr.mxu0 0.0
    %117 = vmatpush1.msra.mxu0 0.0
    %118 = vmatprep.mubr.f32.mxu0 0.0
    %119 = vmatmul.mubr.f32.gmra.mrb[0].mxu0 %v41
    %v120 = vpop.f32.mrb[0].mxu0
    %v121 = vadd.f32 %v25, %v120
    %v122 = vpop.f32.mrb[0].mxu0
    %v123 = vadd.f32 %v25, %v122
    %124 = vmatprep.mubr.f32.mxu0 0.0
    %125 = vmatmul.mubr.f32.gmra.mrb[0].mxu0 %v44
    %v126 = vpop.f32.mrb[0].mxu0
    %v127 = vadd.f32 %v30, %v126
    %v128 = vpop.f32.mrb[0].mxu0
    %v129 = vadd.f32 %v30, %v128
    %130 = vmatprep.mubr.f32.mxu0 0.0
    %131 = vmatmul.mubr.f32.gmra.mrb[0].mxu0 %v47
    %v132 = vpop.f32.mrb[0].mxu0
    %v133 = vadd.f32 %v35, %v132
    %v134 = vpop.f32.mrb[0].mxu0
    %v135 = vadd.f32 %v35, %v134
    %136 = vdwg.mxu0
    %137 = vst [vmem:[#allocation2] sm:$0xff] %v121
    %138 = vst [vmem:[#allocation2 + $0x8] sm:$0xff] %v123
    %139 = vst [vmem:[#allocation2 + $0x10] sm:$0xff] %v127
    %140 = vst [vmem:[#allocation2 + $0x18] sm:$0xff] %v129
    %141 = vst [vmem:[#allocation2 + $0x20] sm:$0xff] %v133
    %142 = vst [vmem:[#allocation2 + $0x28] sm:$0xff] %v135
    %s143 = scalar_lea.vmem %s0, 8
    %v144 = vld [vmem:[%s143] sm:$0xff]
    %v146 = vcombine.high %v144, %v144
    %v147 = vsel %vm49, %v144, 0
    %v149 = vsel %vm49, %v146, 0
    %151 = vmatprep.subr.mxu0 %v149
    %152 = vmatpush1.msra.mxu0 %v147
    %153 = vmatprep.subr.mxu0 0.0
    %154 = vmatpush1.msra.mxu0 0.0
    %155 = vmatprep.subr.mxu0 0.0
    %156 = vmatpush1.msra.mxu0 0.0
    %157 = vmatprep.subr.mxu0 0.0
    %158 = vmatpush1.msra.mxu0 0.0
    %159 = vmatprep.subr.mxu0 0.0
    %160 = vmatpush1.msra.mxu0 0.0
    %161 = vmatprep.subr.mxu0 0.0
    %162 = vmatpush1.msra.mxu0 0.0
    %163 = vmatprep.subr.mxu0 0.0
    %164 = vmatpush1.msra.mxu0 0.0
    %165 = vmatprep.subr.mxu0 0.0
    %166 = vmatpush1.msra.mxu0 0.0
    %167 = vmatprep.subr.mxu0 0.0
    %168 = vmatpush1.msra.mxu0 0.0
    %169 = vmatprep.subr.mxu0 0.0
    %170 = vmatpush1.msra.mxu0 0.0
    %171 = vmatprep.subr.mxu0 0.0
    %172 = vmatpush1.msra.mxu0 0.0
    %173 = vmatprep.subr.mxu0 0.0
    %174 = vmatpush1.msra.mxu0 0.0
    %175 = vmatprep.subr.mxu0 0.0
    %176 = vmatpush1.msra.mxu0 0.0
    %177 = vmatprep.subr.mxu0 0.0
    %178 = vmatpush1.msra.mxu0 0.0
    %179 = vmatprep.subr.mxu0 0.0
    %180 = vmatpush1.msra.mxu0 0.0
    %181 = vmatprep.subr.mxu0 0.0
    %182 = vmatpush1.msra.mxu0 0.0
    %183 = vmatprep.subr.mxu0 0.0
    %184 = vmatpush1.msra.mxu0 0.0
    %185 = vmatprep.subr.mxu0 0.0
    %186 = vmatpush1.msra.mxu0 0.0
    %187 = vmatprep.subr.mxu0 0.0
    %188 = vmatpush1.msra.mxu0 0.0
    %189 = vmatprep.subr.mxu0 0.0
    %190 = vmatpush1.msra.mxu0 0.0
    %191 = vmatprep.subr.mxu0 0.0
    %192 = vmatpush1.msra.mxu0 0.0
    %193 = vmatprep.subr.mxu0 0.0
    %194 = vmatpush1.msra.mxu0 0.0
    %195 = vmatprep.subr.mxu0 0.0
    %196 = vmatpush1.msra.mxu0 0.0
    %197 = vmatprep.subr.mxu0 0.0
    %198 = vmatpush1.msra.mxu0 0.0
    %199 = vmatprep.subr.mxu0 0.0
    %200 = vmatpush1.msra.mxu0 0.0
    %201 = vmatprep.subr.mxu0 0.0
    %202 = vmatpush1.msra.mxu0 0.0
    %203 = vmatprep.subr.mxu0 0.0
    %204 = vmatpush1.msra.mxu0 0.0
    %205 = vmatprep.subr.mxu0 0.0
    %206 = vmatpush1.msra.mxu0 0.0
    %207 = vmatprep.subr.mxu0 0.0
    %208 = vmatpush1.msra.mxu0 0.0
    %209 = vmatprep.subr.mxu0 0.0
    %210 = vmatpush1.msra.mxu0 0.0
    %211 = vmatprep.subr.mxu0 0.0
    %212 = vmatpush1.msra.mxu0 0.0
    %213 = vmatprep.subr.mxu0 0.0
    %214 = vmatpush1.msra.mxu0 0.0
    %215 = vmatprep.mubr.f32.mxu0 0.0
    %216 = vmatmul.mubr.f32.gmra.mrb[0].mxu0 %v41
    %v217 = vpop.f32.mrb[0].mxu0
    %v218 = vadd.f32 %v25, %v217
    %v219 = vpop.f32.mrb[0].mxu0
    %v220 = vadd.f32 %v25, %v219
    %221 = vmatprep.mubr.f32.mxu0 0.0
    %222 = vmatmul.mubr.f32.gmra.mrb[0].mxu0 %v44
    %v223 = vpop.f32.mrb[0].mxu0
    %v224 = vadd.f32 %v30, %v223
    %v225 = vpop.f32.mrb[0].mxu0
    %v226 = vadd.f32 %v30, %v225
    %227 = vmatprep.mubr.f32.mxu0 0.0
    %228 = vmatmul.mubr.f32.gmra.mrb[0].mxu0 %v47
    %v229 = vpop.f32.mrb[0].mxu0
    %v230 = vadd.f32 %v35, %v229
    %v231 = vpop.f32.mrb[0].mxu0
    %v232 = vadd.f32 %v35, %v231
    %233 = vdwg.mxu0
    %s234 = scalar_lea.vmem [#allocation2], 48
    %235 = vst [vmem:[%s234] sm:$0xff] %v218
    %236 = vst [vmem:[%s234 + $0x8] sm:$0xff] %v220
    %237 = vst [vmem:[%s234 + $0x10] sm:$0xff] %v224
    %238 = vst [vmem:[%s234 + $0x18] sm:$0xff] %v226
    %239 = vst [vmem:[%s234 + $0x20] sm:$0xff] %v230
    %240 = vst [vmem:[%s234 + $0x28] sm:$0xff] %v232
    // Predicated region
    $region14: #{tpu_custom_call.1} parent=1 // pred_check
      _
    $region15: #{tpu_custom_call.1} parent=1 // pred_check_branch
      %242 = sbr.rel (0) target = $region17
    $region16: #{tpu_custom_call.1} parent=1 // pred_region
      %s244 = ssub.s32 1536, 1536
      %245 = vsyncadd [#allocation3], %s244
      %s246 = sshll.u32 [#allocation2], 4
      %s247 = int_to_ptr.vmem [resolvable:$true] %s246
      %252 = dma.vmem_to_hbm [thread:$0]  %s247, 1536, %s3, [#allocation3], 256, 256, 16
    $region17: #{tpu_custom_call.1} parent=1 // pred_fallthru
      _
    // Predicated region
    $region18: #{tpu_custom_call.1} parent=1 // pred_check
      _
    $region19: #{tpu_custom_call.1} parent=1 // pred_check_branch
      %254 = sbr.rel (0) target = $region21
    $region20: #{tpu_custom_call.1} parent=1 // pred_region
      %255 = dma.done [#allocation3], 1536
    $region21: #{tpu_custom_call.1} parent=1 // pred_fallthru
      _
    %256 = vsyncpa [#allocation3], 1

</llo_original>
